<compile_context>
chip_gen: v6e
topology: v6e:2x2x1
jax: 0.10.0
libtpu: 0.0.40
codegen_flags: <defaults>
</compile_context>

<pallas_src>
import jax
import jax.numpy as jnp
from jax.experimental import pallas as pl
from jax.experimental.pallas import tpu as pltpu

_LANE = 128
_SUBLANE = 16                 # bf16 sublane packing -> keep batch tiles 16-aligned
_DEFAULT_TILE_B = 512         # big tiles amortize the ~0.35 us/step grid overhead
_VMEM_BUDGET = 24 * 1024 * 1024


def _round_up(x, m):
    return ((x + m - 1) // m) * m


def _mlp_kernel(x_ref, w1_ref, b1_ref, w2_ref, b2_ref, o_ref):
    # hidden = relu(x @ w1 + b1): bf16 operands, f32 MXU accumulation.
    h = jnp.dot(x_ref[...], w1_ref[...], preferred_element_type=jnp.float32)
    # Bias add + ReLU in f32; implicit (1, n_h) -> (TILE_B, n_h) broadcast is
    # free on the VPU (no explicit broadcast materialized).
    h = jnp.maximum(h + b1_ref[...], 0.0)
    # out = h @ w2 + b2 (second matmul also on the bf16 MXU path).
    y = jnp.dot(h.astype(w2_ref.dtype), w2_ref[...],
                preferred_element_type=jnp.float32)
    o_ref[...] = (y + b2_ref[...]).astype(o_ref.dtype)


def _choose_tile_b(batch, n_f, n_h, n_o_pad):
    """Largest batch tile that keeps resident VMEM under budget (v7x-safe)."""
    tile_b = min(_DEFAULT_TILE_B, _round_up(batch, _SUBLANE))
    # Weights/biases counted double-buffered (conservative); x/out tiles are
    # double-buffered by the pipeline; hidden activation is single-buffered.
    w_bytes = 2 * (n_f * n_h * 2 + n_h * n_o_pad * 2 + n_h * 4 + n_o_pad * 4)
    while tile_b > _SUBLANE:
        x_bytes = 2 * tile_b * n_f * 2          # bf16 input tile, double-buffered
        o_bytes = 2 * tile_b * n_o_pad * 4      # f32 output tile, double-buffered
        h_bytes = tile_b * n_h * 4              # f32 hidden intermediate
        if w_bytes + x_bytes + o_bytes + h_bytes <= _VMEM_BUDGET:
            break
        tile_b //= 2
    return max(tile_b, _SUBLANE)


@jax.jit
def net_forward(x, w1, b1, w2, b2):
    """Fused MLP forward: relu(x @ w1 + b1) @ w2 + b2.  (B, n_f) f32 -> (B, n_o) f32."""
    B, n_f = x.shape
    n_h = w1.shape[1]
    n_o = w2.shape[1]

    n_o_pad = _round_up(n_o, _LANE)           # lane-dense output stores
    tile_b = _choose_tile_b(B, n_f, n_h, n_o_pad)
    B_pad = _round_up(B, tile_b)
    num_tiles = B_pad // tile_b

    # bf16 inputs (half the HBM bytes, bf16 MXU); biases stay f32.
    x_p = jnp.pad(x.astype(jnp.bfloat16), ((0, B_pad - B), (0, 0)))
    w1_b = w1.astype(jnp.bfloat16)
    w2_p = jnp.pad(w2.astype(jnp.bfloat16), ((0, 0), (0, n_o_pad - n_o)))
    b2_p = jnp.pad(b2, ((0, 0), (0, n_o_pad - n_o)))

    flops = 2 * B_pad * (n_f * n_h + n_h * n_o_pad)
    bytes_accessed = (x_p.size * 2 + w1_b.size * 2 + w2_p.size * 2
                      + b1.size * 4 + b2_p.size * 4 + B_pad * n_o_pad * 4)

    out = pl.pallas_call(
        _mlp_kernel,
        out_shape=jax.ShapeDtypeStruct((B_pad, n_o_pad), jnp.float32),
        grid_spec=pl.GridSpec(
            grid=(num_tiles,),
            in_specs=[
                pl.BlockSpec((tile_b, n_f), lambda i: (i, 0)),   # batch-tiled x
                pl.BlockSpec((n_f, n_h), lambda i: (0, 0)),      # resident w1
                pl.BlockSpec((1, n_h), lambda i: (0, 0)),        # resident b1
                pl.BlockSpec((n_h, n_o_pad), lambda i: (0, 0)),  # resident w2
                pl.BlockSpec((1, n_o_pad), lambda i: (0, 0)),    # resident b2
            ],
            out_specs=pl.BlockSpec((tile_b, n_o_pad), lambda i: (i, 0)),
        ),
        compiler_params=pltpu.CompilerParams(
            dimension_semantics=("parallel",),        # 2-TC sharding on v7x
            vmem_limit_bytes=32 * 1024 * 1024,
        ),
        cost_estimate=pl.CostEstimate(
            flops=flops, transcendentals=0, bytes_accessed=bytes_accessed),
    )(x_p, w1_b, b1, w2_p, b2_p)

    return out[:B, :n_o]


def init_params(key, n_f, n_h, n_o):
    """Parameter init mimicking torch.nn.Linear's U(-1/sqrt(fan_in), 1/sqrt(fan_in))."""
    k1, k2, k3, k4 = jax.random.split(key, 4)
    bound1 = 1.0 / jnp.sqrt(n_f)
    bound2 = 1.0 / jnp.sqrt(n_h)
    w1 = jax.random.uniform(k1, (n_f, n_h), jnp.float32, -bound1, bound1)
    b1 = jax.random.uniform(k2, (1, n_h), jnp.float32, -bound1, bound1)
    w2 = jax.random.uniform(k3, (n_h, n_o), jnp.float32, -bound2, bound2)
    b2 = jax.random.uniform(k4, (1, n_o), jnp.float32, -bound2, bound2)
    return w1, b1, w2, b2


def _reference(x, w1, b1, w2, b2):
    """Pure-JAX reference with the same bf16-input / f32-accumulation math."""
    h = jnp.dot(x.astype(jnp.bfloat16), w1.astype(jnp.bfloat16),
                preferred_element_type=jnp.float32)
    h = jnp.maximum(h + b1, 0.0)
    y = jnp.dot(h.astype(jnp.bfloat16), w2.astype(jnp.bfloat16),
                preferred_element_type=jnp.float32)
    return y + b2


if __name__ == "__main__":
    # Small shapes consistent with Net(n_f, n_h, n_o) on 2D input (batch, n_f).
    B, n_f, n_h, n_o = 8, 32, 64, 16

    key = jax.random.PRNGKey(0)
    kx, kp, kx2 = jax.random.split(key, 3)
    x = jax.random.normal(kx, (B, n_f), jnp.float32)
    w1, b1, w2, b2 = init_params(kp, n_f, n_h, n_o)

    out = jax.block_until_ready(net_forward(x, w1, b1, w2, b2))
    ref = _reference(x, w1, b1, w2, b2)
    assert out.shape == (B, n_o)
    assert jnp.allclose(out, ref, atol=1e-2, rtol=1e-2)

    # Larger, non-multiple-of-tile batch: exercises batch tiling, the parallel
    # grid axis, and the pad/slice path.
    B2 = 1032
    x2 = jax.random.normal(kx2, (B2, n_f), jnp.float32)
    out2 = jax.block_until_ready(net_forward(x2, w1, b1, w2, b2))
    ref2 = _reference(x2, w1, b1, w2, b2)
    assert out2.shape == (B2, n_o)
    assert jnp.allclose(out2, ref2, atol=1e-2, rtol=1e-2)

    print("KERNEL_OK")
</pallas_src>

<mosaic_0001>
module attributes {stable_mosaic.version = 11 : i64} {
  func.func @_mlp_kernel(%arg0: i32, %arg1: memref<16x32xbf16, #tpu.memory_space<vmem>>, %arg2: memref<32x64xbf16, #tpu.memory_space<vmem>>, %arg3: memref<1x64xf32, #tpu.memory_space<vmem>>, %arg4: memref<64x128xbf16, #tpu.memory_space<vmem>>, %arg5: memref<1x128xf32, #tpu.memory_space<vmem>>, %arg6: memref<16x128xf32, #tpu.memory_space<vmem>>) attributes {dimension_semantics = [#tpu.dimension_semantics<parallel>], iteration_bounds = array<i64: 1>, scalar_prefetch = 0 : i64, scratch_operands = 0 : i64, tpu.core_type = #tpu.core_type<tc>, window_params = [{transform_indices = @transform_0, window_bounds = array<i64: 16, 32>}, {pipeline_mode = #tpu.pipeline_mode<synchronous>, transform_indices = @transform_1, window_bounds = array<i64: 32, 64>}, {pipeline_mode = #tpu.pipeline_mode<synchronous>, transform_indices = @transform_2, window_bounds = array<i64: 1, 64>}, {pipeline_mode = #tpu.pipeline_mode<synchronous>, transform_indices = @transform_3, window_bounds = array<i64: 64, 128>}, {pipeline_mode = #tpu.pipeline_mode<synchronous>, transform_indices = @transform_4, window_bounds = array<i64: 1, 128>}, {transform_indices = @transform_5, window_bounds = array<i64: 16, 128>}]} {
    %c0 = arith.constant 0 : index
    %c0_0 = arith.constant 0 : index
    %0 = vector.load %arg1[%c0, %c0_0] : memref<16x32xbf16, #tpu.memory_space<vmem>>, vector<16x32xbf16>
    %c0_1 = arith.constant 0 : index
    %c0_2 = arith.constant 0 : index
    %1 = vector.load %arg2[%c0_1, %c0_2] : memref<32x64xbf16, #tpu.memory_space<vmem>>, vector<32x64xbf16>
    %cst = arith.constant dense<0.000000e+00> : vector<16x64xf32>
    %2 = tpu.matmul %0, %1, %cst {dimension_numbers = #tpu.dot_dimension_numbers<[1], [0], [0], [1], [0, 0, 1, 1], [], []>} : vector<16x32xbf16>, vector<32x64xbf16>, vector<16x64xf32> -> vector<16x64xf32>
    %c0_3 = arith.constant 0 : index
    %c0_4 = arith.constant 0 : index
    %3 = vector.load %arg3[%c0_3, %c0_4] : memref<1x64xf32, #tpu.memory_space<vmem>>, vector<1x64xf32>
    %4 = vector.broadcast %3 : vector<1x64xf32> to vector<16x64xf32>
    %5 = arith.addf %2, %4 : vector<16x64xf32>
    %cst_5 = arith.constant 0.000000e+00 : f32
    %6 = vector.broadcast %cst_5 : f32 to vector<16x64xf32>
    %7 = arith.maximumf %5, %6 : vector<16x64xf32>
    %8 = arith.truncf %7 : vector<16x64xf32> to vector<16x64xbf16>
    %c0_6 = arith.constant 0 : index
    %c0_7 = arith.constant 0 : index
    %9 = vector.load %arg4[%c0_6, %c0_7] : memref<64x128xbf16, #tpu.memory_space<vmem>>, vector<64x128xbf16>
    %cst_8 = arith.constant dense<0.000000e+00> : vector<16x128xf32>
    %10 = tpu.matmul %8, %9, %cst_8 {dimension_numbers = #tpu.dot_dimension_numbers<[1], [0], [0], [1], [0, 0, 1, 1], [], []>} : vector<16x64xbf16>, vector<64x128xbf16>, vector<16x128xf32> -> vector<16x128xf32>
    %c0_9 = arith.constant 0 : index
    %c0_10 = arith.constant 0 : index
    %11 = vector.load %arg5[%c0_9, %c0_10] : memref<1x128xf32, #tpu.memory_space<vmem>>, vector<1x128xf32>
    %12 = vector.broadcast %11 : vector<1x128xf32> to vector<16x128xf32>
    %13 = arith.addf %10, %12 : vector<16x128xf32>
    %c0_11 = arith.constant 0 : index
    %c0_12 = arith.constant 0 : index
    %14 = vector.load %arg6[%c0_11, %c0_12] : memref<16x128xf32, #tpu.memory_space<vmem>>, vector<16x128xf32>
    tpu.vector_store %arg6[%c0_11, %c0_12], %13 {strides = array<i32>} : memref<16x128xf32, #tpu.memory_space<vmem>>, vector<16x128xf32>,
    return
  }
  func.func @transform_0(%arg0: i32) -> (i32, i32) {
    %c0_i32 = arith.constant 0 : i32
    %c0_i32_0 = arith.constant 0 : i32
    return %arg0, %c0_i32 : i32, i32
  }
  func.func @transform_1(%arg0: i32) -> (i32, i32) {
    %c0_i32 = arith.constant 0 : i32
    %c0_i32_0 = arith.constant 0 : i32
    %c0_i32_1 = arith.constant 0 : i32
    return %c0_i32, %c0_i32_0 : i32, i32
  }
  func.func @transform_2(%arg0: i32) -> (i32, i32) {
    %c0_i32 = arith.constant 0 : i32
    %c0_i32_0 = arith.constant 0 : i32
    %c0_i32_1 = arith.constant 0 : i32
    return %c0_i32, %c0_i32_0 : i32, i32
  }
  func.func @transform_3(%arg0: i32) -> (i32, i32) {
    %c0_i32 = arith.constant 0 : i32
    %c0_i32_0 = arith.constant 0 : i32
    %c0_i32_1 = arith.constant 0 : i32
    return %c0_i32, %c0_i32_0 : i32, i32
  }
  func.func @transform_4(%arg0: i32) -> (i32, i32) {
    %c0_i32 = arith.constant 0 : i32
    %c0_i32_0 = arith.constant 0 : i32
    %c0_i32_1 = arith.constant 0 : i32
    return %c0_i32, %c0_i32_0 : i32, i32
  }
  func.func @transform_5(%arg0: i32) -> (i32, i32) {
    %c0_i32 = arith.constant 0 : i32
    %c0_i32_0 = arith.constant 0 : i32
    return %arg0, %c0_i32 : i32, i32
  }
}

</mosaic_0001>

<llo_original>
// kernel: net_forward.1
$region0: #{net_forward.1}
  #allocation0 [shape = 'u32[]', space=smem, size = 0x4, offset = 0x4, fixed_abs, tag = 'smem constant byte address 0x4 - core index']
  #allocation1 [shape = 'u32[144,128]{1,0:T(1,128)}', space=vmem, size = 0x12000, scoped, tag = 'internal scratch']
  %s0 = inlined_call_operand.vmem [shape: bf16[16,32], index: 0, kind: input, shape index: {}]
  %s1 = inlined_call_operand.vmem [shape: bf16[32,64], index: 1, kind: input, shape index: {}]
  %s2 = inlined_call_operand.vmem [shape: f32[1,64], index: 2, kind: input, shape index: {}]
  %s3 = inlined_call_operand.vmem [shape: bf16[64,128], index: 3, kind: input, shape index: {}]
  %s4 = inlined_call_operand.vmem [shape: f32[1,128], index: 4, kind: input, shape index: {}]
  %s5 = inlined_call_operand.vmem [shape: f32[16,128], index: 5, kind: output, shape index: {}]
  %s6 = sld [smem:[#allocation0]]
  $region30: #{net_forward.1} parent=0
    _
  %s8 = ssub.s32 1, %s6
  %s9 = scalar_select 0, %s8, %s6
  // Predicated region
  $region2: #{net_forward.1} parent=0 // pred_check
    _
  $region3: #{net_forward.1} parent=0 // pred_check_branch
    %11 = sbr.rel (0) target = $region5
  $region4: #{net_forward.1} parent=0 // pred_region
    _
  $region5: #{net_forward.1} parent=0 // pred_fallthru
    _
  // Predicated region
  $region6: #{net_forward.1} parent=0 // pred_check
    _
  $region7: #{net_forward.1} parent=0 // pred_check_branch
    %13 = sbr.rel (0) target = $region9
  $region8: #{net_forward.1} parent=0 // pred_region
    _
  $region9: #{net_forward.1} parent=0 // pred_fallthru
    _
  // Predicated region
  $region10: #{net_forward.1} parent=0 // pred_check
    _
  $region11: #{net_forward.1} parent=0 // pred_check_branch
    %15 = sbr.rel (0) target = $region13
  $region12: #{net_forward.1} parent=0 // pred_region
    _
  $region13: #{net_forward.1} parent=0 // pred_fallthru
    _
  // Predicated region
  $region14: #{net_forward.1} parent=0 // pred_check
    _
  $region15: #{net_forward.1} parent=0 // pred_check_branch
    %17 = sbr.rel (0) target = $region17
  $region16: #{net_forward.1} parent=0 // pred_region
    _
  $region17: #{net_forward.1} parent=0 // pred_fallthru
    _
  // Predicated region
  $region18: #{net_forward.1} parent=0 // pred_check
    _
  $region19: #{net_forward.1} parent=0 // pred_check_branch
    %19 = sbr.rel (0) target = $region21
  $region20: #{net_forward.1} parent=0 // pred_region
    _
  $region21: #{net_forward.1} parent=0 // pred_fallthru
    _
  %v21 = vld [vmem:[%s0] sm:$0xf]
  %v22 = vld [vmem:[%s0 + $0x4] sm:$0xf]
  %v23 = vld [vmem:[%s1] sm:$0xf]
  %v24 = vld [vmem:[%s1 + $0x4] sm:$0xf]
  %v25 = vld [vmem:[%s1 + $0x8] sm:$0xf]
  %v26 = vld [vmem:[%s1 + $0xc] sm:$0xf]
  %v27 = vld [vmem:[%s2] sm:$0x1]
  %v29 = vlaneseq
  %v30 = vshrl.u32 %v29, 7
  %v31 = vsub.s32 0, %v30
  %v32 = vrot.slane %v27, %v31
  %v36 = vunpack.c.l.b16 %v21
  %v37 = vunpack.c.l.b16 %v22
  %v38 = vpack.c.b16 %v37, %v36
  %v43 = vunpack.c.l.b16 %v23
  %v44 = vunpack.c.l.b16 %v24
  %v45 = vunpack.c.l.b16 %v25
  %v46 = vunpack.c.l.b16 %v26
  %v47 = vpack.c.b16 %v44, %v43
  %v48 = vpack.c.b16 %v46, %v45
  %vm51 = vcmask 261120
  %v53 = vsel %vm51, %v38, 0
  %55 = vmatprep.subr.bf16.mxu0 0
  %56 = vmatpush1.bf16.msra.mxu0 0
  %57 = vmatprep.subr.bf16.mxu0 0
  %58 = vmatpush1.bf16.msra.mxu0 0
  %59 = vmatprep.subr.bf16.mxu0 0
  %60 = vmatpush1.bf16.msra.mxu0 0
  %61 = vmatprep.subr.bf16.mxu0 0
  %62 = vmatpush1.bf16.msra.mxu0 0
  %63 = vmatprep.subr.bf16.mxu0 0
  %64 = vmatpush1.bf16.msra.mxu0 0
  %65 = vmatprep.subr.bf16.mxu0 0
  %66 = vmatpush1.bf16.msra.mxu0 0
  %67 = vmatprep.subr.bf16.mxu0 0
  %68 = vmatpush1.bf16.msra.mxu0 %v48
  %69 = vmatprep.subr.bf16.mxu0 0
  %70 = vmatpush1.bf16.msra.mxu0 %v47
  %71 = vmatprep.subr.bf16.mxu0 0
  %72 = vmatpush2.bf16.msra.mxu0 0
  %73 = vmatprep.subr.bf16.mxu0 0
  %74 = vmatpush2.bf16.msra.mxu0 0
  %75 = vmatprep.subr.bf16.mxu0 0
  %76 = vmatpush2.bf16.msra.mxu0 0
  %77 = vmatprep.subr.bf16.mxu0 0
  %78 = vmatpush2.bf16.msra.mxu0 0
  %79 = vmatprep.subr.bf16.mxu0 0
  %80 = vmatpush2.bf16.msra.mxu0 0
  %81 = vmatprep.subr.bf16.mxu0 0
  %82 = vmatpush2.bf16.msra.mxu0 0
  %83 = vmatprep.subr.bf16.mxu0 0
  %84 = vmatpush2.bf16.msra.mxu0 0
  %85 = vmatprep.subr.bf16.mxu0 0
  %86 = vmatpush2.bf16.msra.mxu0 0
  %87 = vmatprep.mubr.bf16.mxu0 0
  %88 = vmatmul.mubr.bf16.gmra.mxu0 %v53
  %v89 = vpop.f32.mrf.mxu0
  %v90 = vadd.f32 %v32, %v89
  %v91 = vpop.f32.mrf.mxu0
  %v92 = vpop.f32.mrf.mxu0
  %v93 = vadd.f32 %v32, %v92
  %v94 = vpop.f32.mrf.mxu0
  %95 = vdwg.mxu0
  %v96 = vmax.f32 %v90, 0.0
  %v97 = vmax.f32 %v93, 0.0
  %v98 = vpack.c.bf16 %v97, %v96
  %v99 = vld [vmem:[%s3] sm:$0xf]
  %v100 = vld [vmem:[%s3 + $0x4] sm:$0xf]
  %v101 = vld [vmem:[%s3 + $0x8] sm:$0xf]
  %v102 = vld [vmem:[%s3 + $0xc] sm:$0xf]
  %v103 = vld [vmem:[%s3 + $0x10] sm:$0xf]
  %v104 = vld [vmem:[%s3 + $0x14] sm:$0xf]
  %v105 = vld [vmem:[%s3 + $0x18] sm:$0xf]
  %v106 = vld [vmem:[%s3 + $0x1c] sm:$0xf]
  %v107 = vld [vmem:[%s4] sm:$0x1]
  %v109 = vlaneseq
  %v110 = vshrl.u32 %v109, 7
  %v111 = vsub.s32 0, %v110
  %v112 = vrot.slane %v107, %v111
  %v122 = vunpack.c.l.b16 %v99
  %v123 = vunpack.c.l.b16 %v100
  %v124 = vunpack.c.l.b16 %v101
  %v125 = vunpack.c.l.b16 %v102
  %v126 = vunpack.c.l.b16 %v103
  %v127 = vunpack.c.l.b16 %v104
  %v128 = vunpack.c.l.b16 %v105
  %v129 = vunpack.c.l.b16 %v106
  %v130 = vpack.c.b16 %v123, %v122
  %v131 = vpack.c.b16 %v125, %v124
  %v132 = vpack.c.b16 %v127, %v126
  %v133 = vpack.c.b16 %v129, %v128
  %vm138 = vcmask 523264
  %v140 = vsel %vm138, %v98, 0
  %142 = vmatprep.subr.bf16.mxu0 0
  %143 = vmatpush1.bf16.msra.mxu0 0
  %144 = vmatprep.subr.bf16.mxu0 0
  %145 = vmatpush1.bf16.msra.mxu0 0
  %146 = vmatprep.subr.bf16.mxu0 0
  %147 = vmatpush1.bf16.msra.mxu0 0
  %148 = vmatprep.subr.bf16.mxu0 0
  %149 = vmatpush1.bf16.msra.mxu0 0
  %150 = vmatprep.subr.bf16.mxu0 0
  %151 = vmatpush1.bf16.msra.mxu0 %v133
  %152 = vmatprep.subr.bf16.mxu0 0
  %153 = vmatpush1.bf16.msra.mxu0 %v132
  %154 = vmatprep.subr.bf16.mxu0 0
  %155 = vmatpush1.bf16.msra.mxu0 %v131
  %156 = vmatprep.subr.bf16.mxu0 0
  %157 = vmatpush1.bf16.msra.mxu0 %v130
  %158 = vmatprep.subr.bf16.mxu0 0
  %159 = vmatpush2.bf16.msra.mxu0 0
  %160 = vmatprep.subr.bf16.mxu0 0
  %161 = vmatpush2.bf16.msra.mxu0 0
  %162 = vmatprep.subr.bf16.mxu0 0
  %163 = vmatpush2.bf16.msra.mxu0 0
  %164 = vmatprep.subr.bf16.mxu0 0
  %165 = vmatpush2.bf16.msra.mxu0 0
  %166 = vmatprep.subr.bf16.mxu0 0
  %167 = vmatpush2.bf16.msra.mxu0 0
  %168 = vmatprep.subr.bf16.mxu0 0
  %169 = vmatpush2.bf16.msra.mxu0 0
  %170 = vmatprep.subr.bf16.mxu0 0
  %171 = vmatpush2.bf16.msra.mxu0 0
  %172 = vmatprep.subr.bf16.mxu0 0
  %173 = vmatpush2.bf16.msra.mxu0 0
  %174 = vmatprep.mubr.bf16.mxu0 0
  %175 = vmatmul.mubr.bf16.gmra.mxu0 %v140
  %v176 = vpop.f32.mrf.mxu0
  %v177 = vadd.f32 %v112, %v176
  %v178 = vpop.f32.mrf.mxu0
  %v179 = vpop.f32.mrf.mxu0
  %v180 = vadd.f32 %v112, %v179
  %v181 = vpop.f32.mrf.mxu0
  %182 = vdwg.mxu0
  %183 = vst [vmem:[%s5] sm:$0xff] %v177
  %184 = vst [vmem:[%s5 + $0x8] sm:$0xff] %v180
  // Predicated region
  $region22: #{net_forward.1} parent=0 // pred_check
    _
  $region23: #{net_forward.1} parent=0 // pred_check_branch
    %186 = sbr.rel (0) target = $region25
  $region24: #{net_forward.1} parent=0 // pred_region
    _
  $region25: #{net_forward.1} parent=0 // pred_fallthru
    _
  // Predicated region
  $region26: #{net_forward.1} parent=0 // pred_check
    _
  $region27: #{net_forward.1} parent=0 // pred_check_branch
    %188 = sbr.rel (0) target = $region29
  $region28: #{net_forward.1} parent=0 // pred_region
    _
  $region29: #{net_forward.1} parent=0 // pred_fallthru
    _

</llo_original>
